<compile_context>
chip_gen: v5e
topology: v5e:2x2
jax: 0.10.0
libtpu: 0.0.40
codegen_flags: <defaults>
</compile_context>

<pallas_src>
import functools

import jax
import jax.numpy as jnp
from jax.experimental import pallas as pl
from jax.experimental.pallas import tpu as pltpu


def _scaled_loss_kernel(lw_ref, state_ref, loss_ref, state_out_ref,
                        *, beta: float, epsilon: float):
    losses = lw_ref[0:1, :]          # (1, N) f32
    w_base = lw_ref[1:2, :]          # (1, N) f32
    a = state_ref[0:1, :]            # (1, N) f32  EMA(loss)
    b = state_ref[1:2, :]            # (1, N) f32  EMA(loss**2)

    # EMA state update (no-grad buffers in torch; plain forward values here).
    a_new = beta * a + (1.0 - beta) * losses
    b_new = beta * b + (1.0 - beta) * losses * losses
    state_out_ref[0:1, :] = a_new
    state_out_ref[1:2, :] = b_new

    # s = sqrt(max(a - b**2, eps)) -- exactly as written in the torch module.
    s = jnp.sqrt(jnp.maximum(a_new - b_new * b_new, jnp.float32(epsilon)))

    # weights = N * s.sum() / s * base_weights; the N*s.sum() factor cancels in
    # (losses*weights).sum() / weights.sum(), so only r = base_weights / s is
    # needed.  (pl.reciprocal(approx=True) deliberately NOT used: its ~bf16
    # level relative error would not meet the 1e-5 rtol check.)
    r = w_base / s
    num = jnp.sum(losses * r, keepdims=True)     # (1, 1)
    den = jnp.sum(r, keepdims=True)              # (1, 1)
    loss = num / den                             # (1, 1)
    loss_ref[0, 0] = loss[0, 0]                  # scalar out via SMEM


@functools.partial(jax.jit, static_argnames=("beta", "epsilon"))
def scaled_loss_forward(losses, weights, a, b, *, beta: float, epsilon: float):
    """Returns (scalar_loss, a_new, b_new). All inputs are 1-D of length N."""
    n = losses.shape[0]
    lw = jnp.stack([losses, weights]).astype(jnp.float32)    # (2, N) packed
    state = jnp.stack([a, b]).astype(jnp.float32)            # (2, N) packed

    kernel = functools.partial(_scaled_loss_kernel, beta=float(beta),
                               epsilon=float(epsilon))
    vmem = pl.BlockSpec(memory_space=pltpu.MemorySpace.VMEM)
    smem = pl.BlockSpec(memory_space=pltpu.MemorySpace.SMEM)

    loss, state_new = pl.pallas_call(
        kernel,
        out_shape=(
            jax.ShapeDtypeStruct((1, 1), jnp.float32),   # scalar loss (SMEM)
            jax.ShapeDtypeStruct((2, n), jnp.float32),   # packed [a_new; b_new]
        ),
        in_specs=[vmem, vmem],
        out_specs=(smem, vmem),
        input_output_aliases={1: 1},                     # EMA state in-place
    )(lw, state)

    return loss[0, 0], state_new[0], state_new[1]


def scaled_loss_ref(losses, weights, a, b, *, beta, epsilon):
    # Literal transcription of the torch module (keeps the N*s.sum() factor so
    # the kernel's algebraic cancellation is validated against the original).
    losses = losses.astype(jnp.float32)
    a_new = beta * a + (1.0 - beta) * losses
    b_new = beta * b + (1.0 - beta) * losses ** 2
    s = jnp.sqrt(jnp.maximum(a_new - b_new ** 2, epsilon))
    w = losses.shape[0] * jnp.sum(s) / s * weights
    loss = jnp.sum(losses * w) / jnp.sum(w)
    return loss, a_new, b_new


if __name__ == "__main__":
    key = jax.random.PRNGKey(0)
    k1, k2 = jax.random.split(key)

    num_tasks = 8          # number of per-task losses
    beta = 0.9
    epsilon = 1e-5

    # Deterministic synthetic inputs / parameters (module __init__: weights
    # given, a = b = zeros_like(weights)).
    losses = jax.random.uniform(k1, (num_tasks,), jnp.float32, 0.1, 2.0)
    base_weights = jax.random.uniform(k2, (num_tasks,), jnp.float32, 0.5, 1.5)
    a0 = jnp.zeros((num_tasks,), jnp.float32)
    b0 = jnp.zeros((num_tasks,), jnp.float32)

    loss, a1, b1 = scaled_loss_forward(losses, base_weights, a0, b0,
                                       beta=beta, epsilon=epsilon)
    jax.block_until_ready((loss, a1, b1))

    loss_r, a_r, b_r = scaled_loss_ref(losses, base_weights, a0, b0,
                                       beta=beta, epsilon=epsilon)
    assert jnp.allclose(loss, loss_r, rtol=1e-5, atol=1e-6), (loss, loss_r)
    assert jnp.allclose(a1, a_r, rtol=1e-5, atol=1e-6)
    assert jnp.allclose(b1, b_r, rtol=1e-5, atol=1e-6)

    # Second step to exercise the EMA state-carry semantics (and jit cache hit).
    loss2, a2, b2 = scaled_loss_forward(losses * 0.5, base_weights, a1, b1,
                                        beta=beta, epsilon=epsilon)
    jax.block_until_ready((loss2, a2, b2))
    loss2_r, a2_r, b2_r = scaled_loss_ref(losses * 0.5, base_weights,
                                          a_r, b_r, beta=beta, epsilon=epsilon)
    assert jnp.allclose(loss2, loss2_r, rtol=1e-5, atol=1e-6), (loss2, loss2_r)
    assert jnp.allclose(a2, a2_r, rtol=1e-5, atol=1e-6)
    assert jnp.allclose(b2, b2_r, rtol=1e-5, atol=1e-6)

    print("KERNEL_OK")
</pallas_src>

<mosaic_0001>
module attributes {stable_mosaic.version = 11 : i64} {
  func.func @_scaled_loss_kernel(%arg0: memref<2x8xf32, #tpu.memory_space<vmem>>, %arg1: memref<2x8xf32, #tpu.memory_space<vmem>>, %arg2: memref<1x1xf32, #tpu.memory_space<smem>>, %arg3: memref<2x8xf32, #tpu.memory_space<vmem>>) attributes {dimension_semantics = [], scalar_prefetch = 0 : i64, scratch_operands = 0 : i64, tpu.core_type = #tpu.core_type<tc>} {
    %c0 = arith.constant 0 : index
    %c0_0 = arith.constant 0 : index
    %0 = vector.load %arg0[%c0, %c0_0] : memref<2x8xf32, #tpu.memory_space<vmem>>, vector<1x8xf32>
    %c1 = arith.constant 1 : index
    %c0_1 = arith.constant 0 : index
    %1 = vector.load %arg0[%c1, %c0_1] : memref<2x8xf32, #tpu.memory_space<vmem>>, vector<1x8xf32>
    %c0_2 = arith.constant 0 : index
    %c0_3 = arith.constant 0 : index
    %2 = vector.load %arg1[%c0_2, %c0_3] : memref<2x8xf32, #tpu.memory_space<vmem>>, vector<1x8xf32>
    %c1_4 = arith.constant 1 : index
    %c0_5 = arith.constant 0 : index
    %3 = vector.load %arg1[%c1_4, %c0_5] : memref<2x8xf32, #tpu.memory_space<vmem>>, vector<1x8xf32>
    %cst = arith.constant 0.899999976 : f32
    %4 = vector.broadcast %cst : f32 to vector<1x8xf32>
    %5 = arith.mulf %4, %2 : vector<1x8xf32>
    %cst_6 = arith.constant 1.000000e-01 : f32
    %6 = vector.broadcast %cst_6 : f32 to vector<1x8xf32>
    %7 = arith.mulf %6, %0 : vector<1x8xf32>
    %8 = arith.addf %5, %7 : vector<1x8xf32>
    %cst_7 = arith.constant 0.899999976 : f32
    %9 = vector.broadcast %cst_7 : f32 to vector<1x8xf32>
    %10 = arith.mulf %9, %3 : vector<1x8xf32>
    %cst_8 = arith.constant 1.000000e-01 : f32
    %11 = vector.broadcast %cst_8 : f32 to vector<1x8xf32>
    %12 = arith.mulf %11, %0 : vector<1x8xf32>
    %13 = arith.mulf %12, %0 : vector<1x8xf32>
    %14 = arith.addf %10, %13 : vector<1x8xf32>
    %c0_9 = arith.constant 0 : index
    %c0_10 = arith.constant 0 : index
    %15 = vector.load %arg3[%c0_9, %c0_10] : memref<2x8xf32, #tpu.memory_space<vmem>>, vector<1x8xf32>
    tpu.vector_store %arg3[%c0_9, %c0_10], %8 {strides = array<i32>} : memref<2x8xf32, #tpu.memory_space<vmem>>, vector<1x8xf32>,
    %c1_11 = arith.constant 1 : index
    %c0_12 = arith.constant 0 : index
    %16 = vector.load %arg3[%c1_11, %c0_12] : memref<2x8xf32, #tpu.memory_space<vmem>>, vector<1x8xf32>
    tpu.vector_store %arg3[%c1_11, %c0_12], %14 {strides = array<i32>} : memref<2x8xf32, #tpu.memory_space<vmem>>, vector<1x8xf32>,
    %17 = arith.mulf %14, %14 : vector<1x8xf32>
    %18 = arith.subf %8, %17 : vector<1x8xf32>
    %cst_13 = arith.constant 9.99999974E-6 : f32
    %19 = vector.broadcast %cst_13 : f32 to vector<1x8xf32>
    %20 = arith.maximumf %18, %19 : vector<1x8xf32>
    %21 = math.sqrt %20 : vector<1x8xf32>
    %22 = arith.divf %1, %21 : vector<1x8xf32>
    %23 = arith.mulf %0, %22 : vector<1x8xf32>
    %24 = vector.shape_cast %23 : vector<1x8xf32> to vector<1x1x8xf32>
    %cst_14 = arith.constant dense<0.000000e+00> : vector<1xf32>
    %25 = vector.multi_reduction <add>, %24, %cst_14 [1, 2] : vector<1x1x8xf32> to vector<1xf32>
    %26 = vector.shape_cast %25 : vector<1xf32> to vector<1x1x1xf32>
    %27 = vector.extract %26[0, 0, 0] : f32 from vector<1x1x1xf32>
    %28 = vector.broadcast %27 : f32 to vector<1x1xf32>
    %29 = vector.shape_cast %22 : vector<1x8xf32> to vector<1x1x8xf32>
    %cst_15 = arith.constant dense<0.000000e+00> : vector<1xf32>
    %30 = vector.multi_reduction <add>, %29, %cst_15 [1, 2] : vector<1x1x8xf32> to vector<1xf32>
    %31 = vector.shape_cast %30 : vector<1xf32> to vector<1x1x1xf32>
    %32 = vector.extract %31[0, 0, 0] : f32 from vector<1x1x1xf32>
    %33 = vector.broadcast %32 : f32 to vector<1x1xf32>
    %34 = arith.divf %28, %33 : vector<1x1xf32>
    %35 = vector.extract %34[0, 0] : f32 from vector<1x1xf32>
    %c0_16 = arith.constant 0 : index
    %c0_17 = arith.constant 0 : index
    %36 = memref.load %arg2[%c0_16, %c0_17] : memref<1x1xf32, #tpu.memory_space<smem>>
    memref.store %35, %arg2[%c0_16, %c0_17] : memref<1x1xf32, #tpu.memory_space<smem>>
    return
  }
}

</mosaic_0001>

<llo_original>
// kernel: scaled_loss_forward.1
$region0: #{scaled_loss_forward.1}
  #allocation0 [shape = 'u32[]', space=smem, size = 0x4, offset = 0x4, fixed_abs, tag = 'smem constant byte address 0x4 - core index']
  #allocation1 [shape = 'u32[72,128]{1,0:T(1,128)}', space=vmem, size = 0x9000, scoped, tag = 'internal scratch']
  %s0 = inlined_call_operand.vmem [shape: f32[2,8], index: 0, kind: input, shape index: {}]
  %s1 = inlined_call_operand.vmem [shape: f32[2,8], index: 1, kind: input, shape index: {}, may-alias: {1,3}]
  %s2 = inlined_call_operand.hbm [shape: f32[1,1], index: 2, kind: output, shape index: {0}]
  %s3 = inlined_call_operand.vmem [shape: f32[2,8], index: 3, kind: output, shape index: {1}, may-alias: {1,3}]
  %4 = xla_tuple %s2, %s3
  %s5 = sld [smem:[#allocation0]]
  $region26: #{scaled_loss_forward.1} parent=0
    _
  %s7 = ssub.s32 1, %s5
  %s8 = scalar_select 0, %s7, %s5
  $region1: #{scaled_loss_forward.1} parent=0
    #allocation2 [shape = 'u8[512]{0}', space=smem, size = 0x200, scoped, tag = 'output window, operand 0, single buffered']
    #allocation3 [shape = 's32[1]{0}', space=sflag, size = 0x4, scoped, tag = 'scoped memory for scaled_loss_forward.1']
    %9 = vsyncpa [#allocation3], 0
    // Predicated region
    $region2: #{scaled_loss_forward.1} parent=1 // pred_check
      _
    $region3: #{scaled_loss_forward.1} parent=1 // pred_check_branch
      %11 = sbr.rel (0) target = $region5
    $region4: #{scaled_loss_forward.1} parent=1 // pred_region
      _
    $region5: #{scaled_loss_forward.1} parent=1 // pred_fallthru
      _
    // Predicated region
    $region6: #{scaled_loss_forward.1} parent=1 // pred_check
      _
    $region7: #{scaled_loss_forward.1} parent=1 // pred_check_branch
      %13 = sbr.rel (0) target = $region9
    $region8: #{scaled_loss_forward.1} parent=1 // pred_region
      _
    $region9: #{scaled_loss_forward.1} parent=1 // pred_fallthru
      _
    %v14 = vld [vmem:[%s0] sm:$0x1]
    %v15 = vld [vmem:[%s0 + $0x1] sm:$0x1]
    %v16 = vld [vmem:[%s1] sm:$0x1]
    %v17 = vld [vmem:[%s1 + $0x1] sm:$0x1]
    %v18 = vmul.f32 %v16, 0.9
    %v19 = vmul.f32 %v14, 0.1
    %v20 = vadd.f32 %v18, %v19
    %v21 = vmul.f32 %v17, 0.9
    %v22 = vmul.f32 %v19, %v14
    %v23 = vadd.f32 %v21, %v22
    %vm24 = vcmask 57344
    %25 = vst.msk [vmem:[%s3] sm:$0x1] %vm24, %v20
    %26 = vst.msk [vmem:[%s3 + $0x1] sm:$0x1] %vm24, %v23
    %v27 = vmul.f32 %v23, %v23
    %v28 = vsub.f32 %v20, %v27
    %v29 = vmax.f32 %v28, 1e-05
    %v30 = vrsqrt.pop %v29
    %v31 = vmul.f32 %v30, %v29
    %v32 = vmul.f32 %v31, %v30
    %v33 = vmul.f32 0.5, %v32
    %v34 = vsub.f32 1.5, %v33
    %v35 = vmul.f32 %v30, %v34
    %v36 = vmul.f32 %v29, %v35
    %vm37 = vcmp.eq.f32.partialorder %v29, inf
    %v38 = vsel %vm37, %v29, %v36
    %vm39 = vcmp.eq.f32.partialorder %v29, 0.0
    %v40 = vand.u32 %v29, 2147483648
    %v41 = vsel %vm39, %v40, %v38
    %v42 = vrcp.pop %v41
    %v43 = vmul.f32 %v41, %v42
    %v44 = vsub.f32 1.0, %v43
    %v45 = vmul.f32 %v42, %v44
    %v46 = vadd.f32 %v42, %v45
    %vm47 = vweird.f32 %v41
    %vm48 = vweird.f32 %v42
    %vm49 = vmor %vm47, %vm48
    %v50 = vsel %vm49, %v42, %v46
    %v51 = vand.u32 2147483647, %v41
    %vm52 = vcmp.eq.f32.partialorder %v51, 8.507059e+37
    %v53 = vand.u32 %v41, 2147483648
    %v54 = vor.u32 1.1754944e-38, %v53
    %v55 = vsel %vm52, %v54, %v50
    %v56 = vmul.f32 %v15, %v55
    %v57 = vmul.f32 %v14, %v56
    %v58 = vsel %vm24, %v57, 0.0
    %59 = vadd.xlane.f32.xlu0 %v58
    %v60 = vpop.xlane.xlu0 %59
    %v61 = vrot.slane %v60, 4
    %v62 = vadd.f32 %v60, %v61
    %v63 = vrot.slane %v62, 2
    %v64 = vadd.f32 %v62, %v63
    %v65 = vrot.slane %v64, 1
    %v66 = vadd.f32 %v64, %v65
    %s67 = vtos %v66
    %v68 = vstv %s67
    %v69 = vsel %vm24, %v56, 0.0
    %70 = vadd.xlane.f32.xlu0 %v69
    %v71 = vpop.xlane.xlu0 %70
    %v72 = vrot.slane %v71, 4
    %v73 = vadd.f32 %v71, %v72
    %v74 = vrot.slane %v73, 2
    %v75 = vadd.f32 %v73, %v74
    %v76 = vrot.slane %v75, 1
    %v77 = vadd.f32 %v75, %v76
    %s78 = vtos %v77
    %v79 = vstv %s78
    %v80 = vrcp.pop %v79
    %v81 = vmul.f32 %v79, %v80
    %v82 = vsub.f32 1.0, %v81
    %v83 = vmul.f32 %v80, %v82
    %v84 = vadd.f32 %v80, %v83
    %vm85 = vweird.f32 %v79
    %vm86 = vweird.f32 %v80
    %vm87 = vmor %vm85, %vm86
    %v88 = vsel %vm87, %v80, %v84
    %v89 = vand.u32 2147483647, %v79
    %vm90 = vcmp.eq.f32.partialorder %v89, 8.507059e+37
    %v91 = vand.u32 %v79, 2147483648
    %v92 = vor.u32 1.1754944e-38, %v91
    %v93 = vsel %vm90, %v92, %v88
    %v94 = vmul.f32 %v68, %v93
    %s95 = vtos %v94
    %s96 = scalar_lea.smem [#allocation2], 0
    %97 = sst [smem:[%s96]] %s95
    // Predicated region
    $region10: #{scaled_loss_forward.1} parent=1 // pred_check
      _
    $region11: #{scaled_loss_forward.1} parent=1 // pred_check_branch
      %99 = sbr.rel (0) target = $region13
    $region12: #{scaled_loss_forward.1} parent=1 // pred_region
      %101 = vsyncadd [#allocation3], 0
      %s103 = sshll.u32 %s2, 4
      %s104 = int_to_ptr.hbm [resolvable:$true] %s103
      %106 = dma.smem_to_hbm [#allocation2], 16, %s104, [#allocation3]
    $region13: #{scaled_loss_forward.1} parent=1 // pred_fallthru
      _
    // Predicated region
    $region14: #{scaled_loss_forward.1} parent=1 // pred_check
      _
    $region15: #{scaled_loss_forward.1} parent=1 // pred_check_branch
      %108 = sbr.rel (0) target = $region17
    $region16: #{scaled_loss_forward.1} parent=1 // pred_region
      _
    $region17: #{scaled_loss_forward.1} parent=1 // pred_fallthru
      _
    // Predicated region
    $region18: #{scaled_loss_forward.1} parent=1 // pred_check
      _
    $region19: #{scaled_loss_forward.1} parent=1 // pred_check_branch
      %110 = sbr.rel (0) target = $region21
    $region20: #{scaled_loss_forward.1} parent=1 // pred_region
      %112 = dma.done [#allocation3], 16
    $region21: #{scaled_loss_forward.1} parent=1 // pred_fallthru
      _
    // Predicated region
    $region22: #{scaled_loss_forward.1} parent=1 // pred_check
      _
    $region23: #{scaled_loss_forward.1} parent=1 // pred_check_branch
      %114 = sbr.rel (0) target = $region25
    $region24: #{scaled_loss_forward.1} parent=1 // pred_region
      _
    $region25: #{scaled_loss_forward.1} parent=1 // pred_fallthru
      _
    %115 = sfence
    %116 = vsyncpa [#allocation3], 1

</llo_original>
